<compile_context>
chip_gen: v7x
topology: tpu7x:2x2x1
jax: 0.10.0
libtpu: 0.0.40
codegen_flags: <defaults>
</compile_context>

<pallas_src>
import functools

import jax
import jax.numpy as jnp
from jax.experimental import pallas as pl
from jax.experimental.pallas import tpu as pltpu


def _round_up(x, m):
    return ((x + m - 1) // m) * m


def _tpu_config():
    """(num_cores, per_input_buffer_bytes, vmem_limit_bytes) for this chip."""
    vmem_cap = 128 * 1024 * 1024
    try:
        vmem_cap = int(pltpu.get_tpu_info().vmem_capacity_bytes)
    except Exception:
        pass
    num_cores = 1
    try:
        kind = jax.devices()[0].device_kind.lower()
        if "v7" in kind:            # 2 TensorCores per chip
            num_cores = 2
    except Exception:
        pass
    if vmem_cap <= 64 * 1024 * 1024:           # v7x: 64 MiB VMEM per TC
        return num_cores, 2 * 1024 * 1024, 48 * 1024 * 1024
    return num_cores, 4 * 1024 * 1024, 64 * 1024 * 1024  # v5e / v6e: 128 MiB


def superloss_kernel(logits_ref, targets_ref, inv_temp_ref, loss_ref, centers_ref):
    """One (TB, C) batch tile: accumulate loss-sum and per-class prob sums."""
    step = pl.program_id(1)

    @pl.when(step == 0)
    def _init():
        loss_ref[...] = jnp.zeros_like(loss_ref)
        centers_ref[...] = jnp.zeros_like(centers_ref)

    logits = logits_ref[...].astype(jnp.float32)           # (TB, C)
    tgt = targets_ref[...]                                  # (TB, 1) int32
    inv_temp = inv_temp_ref[...]                            # (1, C)  float32
    TB, C = logits.shape

    # Padded rows carry target == -1 so is_target is all-False and valid == 0.
    class_ids = jax.lax.broadcasted_iota(jnp.int32, (TB, C), 1)
    is_target = class_ids == tgt                            # (TB, C) bool
    valid = (tgt >= 0).astype(jnp.float32)                  # (TB, 1)

    # softmax(logits, dim=1): padding mask folded into the row-scalar reciprocal,
    # so the masked probabilities cost a single (TB,C) multiply.
    m0 = jnp.max(logits, axis=1, keepdims=True)
    e0 = jnp.exp(logits - m0)
    inv_den = pl.reciprocal(jnp.sum(e0, axis=1, keepdims=True), approx=False)
    probs_masked = e0 * (inv_den * valid)                   # (TB, C)
    centers_ref[...] += jnp.sum(probs_masked, axis=0, keepdims=True)[None]

    # cross_entropy(logits * inv_temperature, targets, reduction='none') summed.
    adjusted = logits * inv_temp                            # (TB, C)
    m1 = jnp.max(adjusted, axis=1, keepdims=True)
    lse = m1 + jnp.log(jnp.sum(jnp.exp(adjusted - m1), axis=1, keepdims=True))
    picked = jnp.sum(jnp.where(is_target, adjusted, 0.0), axis=1, keepdims=True)
    loss_ref[...] += jnp.sum((lse - picked) * valid, axis=0, keepdims=True)[None]


@functools.partial(
    jax.jit,
    static_argnames=("momentum", "base_temp", "num_cores", "max_tile",
                     "per_buffer_bytes", "vmem_limit_bytes"))
def _superloss_impl(logits, targets, temperature, class_counts, class_centers,
                    *, momentum, base_temp, num_cores, max_tile,
                    per_buffer_bytes, vmem_limit_bytes):
    B, C = logits.shape

    # ---- tiling: batch tile sized per-chip (input slab <= per_buffer_bytes) ----
    lane_pad = _round_up(max(C, 128), 128)
    bytes_per_row = lane_pad * jnp.dtype(logits.dtype).itemsize
    tb_cap = max(16, min(max_tile, (per_buffer_bytes // bytes_per_row) // 16 * 16))
    rows_per_core = -(-B // num_cores)
    TB = min(tb_cap, _round_up(rows_per_core, 16))
    steps = -(-rows_per_core // TB)
    B_pad = num_cores * steps * TB

    # ---- pad batch; padded rows masked via target == -1 inside the kernel ----
    targets2d = targets.reshape(B, 1).astype(jnp.int32)
    if B_pad != B:
        pad = B_pad - B
        logits_p = jnp.concatenate(
            [logits, jnp.zeros((pad, C), logits.dtype)], axis=0)
        targets_p = jnp.concatenate(
            [targets2d, jnp.full((pad, 1), -1, jnp.int32)], axis=0)
    else:
        logits_p, targets_p = logits, targets2d

    # reciprocal of the per-class temperature computed once, outside the kernel
    inv_temp2d = (1.0 / temperature.astype(jnp.float32)).reshape(1, C)

    loss_sum, prob_sum = pl.pallas_call(
        superloss_kernel,
        out_shape=(
            jax.ShapeDtypeStruct((num_cores, 1, 1), jnp.float32),
            jax.ShapeDtypeStruct((num_cores, 1, C), jnp.float32),
        ),
        grid=(num_cores, steps),
        in_specs=[
            pl.BlockSpec((TB, C), lambda c, i: (c * steps + i, 0)),
            pl.BlockSpec((TB, 1), lambda c, i: (c * steps + i, 0)),
            pl.BlockSpec((1, C), lambda c, i: (0, 0)),
        ],
        out_specs=(
            pl.BlockSpec((1, 1, 1), lambda c, i: (c, 0, 0)),
            pl.BlockSpec((1, 1, C), lambda c, i: (c, 0, 0)),
        ),
        compiler_params=pltpu.CompilerParams(
            dimension_semantics=("parallel", "arbitrary"),
            vmem_limit_bytes=vmem_limit_bytes,
        ),
    )(logits_p, targets_p, inv_temp2d)

    # ---- plain-JAX glue: counts, normalization, momentum buffer updates ----
    inv_B = 1.0 / B
    loss = jnp.sum(loss_sum) * inv_B
    centers_mean = jnp.sum(prob_sum, axis=(0, 1)) * inv_B               # (C,)
    counts_total = jnp.zeros((C,), jnp.float32).at[targets].add(1.0)    # (C,)

    new_counts = momentum * class_counts + (1.0 - momentum) * counts_total
    new_centers = momentum * class_centers + (1.0 - momentum) * centers_mean
    # `temp = base_temp * (class_counts / class_counts.mean())` is computed but
    # never used for the returned loss in the reference module, so it is omitted.
    return loss, new_counts, new_centers


def superloss_forward(logits, targets, temperature, class_counts, class_centers,
                      momentum=0.95, base_temp=0.05, max_tile=4096):
    num_cores, per_buf, vmem_limit = _tpu_config()
    return _superloss_impl(
        logits, targets, temperature, class_counts, class_centers,
        momentum=momentum, base_temp=base_temp, num_cores=num_cores,
        max_tile=max_tile, per_buffer_bytes=per_buf,
        vmem_limit_bytes=vmem_limit)


def superloss_reference(logits, targets, temperature):
    probs = jax.nn.softmax(logits.astype(jnp.float32), axis=1)
    adjusted = logits.astype(jnp.float32) / temperature[None, :]
    logz = jax.nn.logsumexp(adjusted, axis=1)
    picked = jnp.take_along_axis(adjusted, targets[:, None], axis=1)[:, 0]
    return jnp.mean(logz - picked), probs


if __name__ == "__main__":
    num_classes = 16
    batch = 8
    momentum = 0.95
    base_temp = 0.05

    key = jax.random.PRNGKey(0)
    k1, k2 = jax.random.split(key)
    logits = jax.random.normal(k1, (batch, num_classes), dtype=jnp.float32)
    targets = jax.random.randint(k2, (batch,), 0, num_classes, dtype=jnp.int32)

    # deterministic parameter / buffer init (matches module __init__)
    temperature = jnp.ones((num_classes,), jnp.float32) * base_temp
    class_centers = jnp.zeros((num_classes,), jnp.float32)
    class_counts = jnp.ones((num_classes,), jnp.float32)

    loss, new_counts, new_centers = superloss_forward(
        logits, targets, temperature, class_counts, class_centers,
        momentum=momentum, base_temp=base_temp)
    jax.block_until_ready((loss, new_counts, new_centers))

    # correctness check against pure-JAX reference
    ref_loss, ref_probs = superloss_reference(logits, targets, temperature)
    ref_counts = momentum * class_counts + (1 - momentum) * jax.nn.one_hot(
        targets, num_classes).sum(0)
    ref_centers = momentum * class_centers + (1 - momentum) * ref_probs.mean(0)
    assert jnp.allclose(loss, ref_loss, atol=1e-5, rtol=1e-5), (loss, ref_loss)
    assert jnp.allclose(new_counts, ref_counts, atol=1e-5, rtol=1e-5)
    assert jnp.allclose(new_centers, ref_centers, atol=1e-5, rtol=1e-5)

    print("KERNEL_OK")
</pallas_src>

<mosaic_0001>
module attributes {stable_mosaic.version = 11 : i64} {
  func.func @superloss_kernel(%arg0: i32, %arg1: i32, %arg2: memref<16x16xf32, #tpu.memory_space<vmem>>, %arg3: memref<16x1xi32, #tpu.memory_space<vmem>>, %arg4: memref<1x16xf32, #tpu.memory_space<vmem>>, %arg5: memref<1x1x1xf32, #tpu.memory_space<vmem>>, %arg6: memref<1x1x16xf32, #tpu.memory_space<vmem>>) attributes {dimension_semantics = [#tpu.dimension_semantics<parallel>, #tpu.dimension_semantics<arbitrary>], iteration_bounds = array<i64: 1, 1>, scalar_prefetch = 0 : i64, scratch_operands = 0 : i64, tpu.core_type = #tpu.core_type<tc>, window_params = [{transform_indices = @transform_0, window_bounds = array<i64: 16, 16>}, {transform_indices = @transform_1, window_bounds = array<i64: 16, 1>}, {pipeline_mode = #tpu.pipeline_mode<synchronous>, transform_indices = @transform_2, window_bounds = array<i64: 1, 16>}, {transform_indices = @transform_3, window_bounds = array<i64: 1, 1, 1>}, {transform_indices = @transform_4, window_bounds = array<i64: 1, 1, 16>}]} {
    %c0_i32 = arith.constant 0 : i32
    %0 = arith.cmpi eq, %arg1, %c0_i32 : i32
    %1 = arith.extui %0 : i1 to i32
    %c0_i32_0 = arith.constant 0 : i32
    %2 = arith.cmpi ne, %1, %c0_i32_0 : i32
    scf.if %2 {
      %cst_26 = arith.constant 0.000000e+00 : f32
      %53 = vector.broadcast %cst_26 : f32 to vector<1x1x1xf32>
      %c0_27 = arith.constant 0 : index
      %c0_28 = arith.constant 0 : index
      %c0_29 = arith.constant 0 : index
      %54 = vector.load %arg5[%c0_27, %c0_28, %c0_29] : memref<1x1x1xf32, #tpu.memory_space<vmem>>, vector<1x1x1xf32>
      tpu.vector_store %arg5[%c0_27, %c0_28, %c0_29], %53 {strides = array<i32>} : memref<1x1x1xf32, #tpu.memory_space<vmem>>, vector<1x1x1xf32>,
      %cst_30 = arith.constant 0.000000e+00 : f32
      %55 = vector.broadcast %cst_30 : f32 to vector<1x1x16xf32>
      %c0_31 = arith.constant 0 : index
      %c0_32 = arith.constant 0 : index
      %c0_33 = arith.constant 0 : index
      %56 = vector.load %arg6[%c0_31, %c0_32, %c0_33] : memref<1x1x16xf32, #tpu.memory_space<vmem>>, vector<1x1x16xf32>
      tpu.vector_store %arg6[%c0_31, %c0_32, %c0_33], %55 {strides = array<i32>} : memref<1x1x16xf32, #tpu.memory_space<vmem>>, vector<1x1x16xf32>,
    } else {
    }
    %c0 = arith.constant 0 : index
    %c0_1 = arith.constant 0 : index
    %3 = vector.load %arg2[%c0, %c0_1] : memref<16x16xf32, #tpu.memory_space<vmem>>, vector<16x16xf32>
    %c0_2 = arith.constant 0 : index
    %c0_3 = arith.constant 0 : index
    %4 = vector.load %arg3[%c0_2, %c0_3] : memref<16x1xi32, #tpu.memory_space<vmem>>, vector<16x1xi32>
    %c0_4 = arith.constant 0 : index
    %c0_5 = arith.constant 0 : index
    %5 = vector.load %arg4[%c0_4, %c0_5] : memref<1x16xf32, #tpu.memory_space<vmem>>, vector<1x16xf32>
    %6 = tpu.iota {dimensions = array<i32: 1>} : vector<16x16xi32>
    %7 = vector.broadcast %4 : vector<16x1xi32> to vector<16x16xi32>
    %8 = arith.cmpi eq, %6, %7 : vector<16x16xi32>
    %c0_i32_6 = arith.constant 0 : i32
    %9 = vector.broadcast %c0_i32_6 : i32 to vector<16x1xi32>
    %10 = arith.cmpi sge, %4, %9 : vector<16x1xi32>
    %11 = arith.extui %10 : vector<16x1xi1> to vector<16x1xi32>
    %12 = arith.sitofp %11 : vector<16x1xi32> to vector<16x1xf32>
    %cst = arith.constant dense<0xFF800000> : vector<16xf32>
    %13 = vector.multi_reduction <maximumf>, %3, %cst [1] : vector<16x16xf32> to vector<16xf32>
    %14 = vector.shape_cast %13 : vector<16xf32> to vector<16x1xf32>
    %15 = vector.broadcast %14 : vector<16x1xf32> to vector<16x16xf32>
    %16 = arith.subf %3, %15 : vector<16x16xf32>
    %17 = math.exp %16 : vector<16x16xf32>
    %cst_7 = arith.constant dense<0.000000e+00> : vector<16xf32>
    %18 = vector.multi_reduction <add>, %17, %cst_7 [1] : vector<16x16xf32> to vector<16xf32>
    %19 = vector.shape_cast %18 : vector<16xf32> to vector<16x1xf32>
    %20 = tpu.reciprocal %19 : vector<16x1xf32> -> vector<16x1xf32>
    %21 = arith.mulf %20, %12 : vector<16x1xf32>
    %22 = vector.broadcast %21 : vector<16x1xf32> to vector<16x16xf32>
    %23 = arith.mulf %17, %22 : vector<16x16xf32>
    %c0_8 = arith.constant 0 : index
    %c0_9 = arith.constant 0 : index
    %c0_10 = arith.constant 0 : index
    %24 = vector.load %arg6[%c0_8, %c0_9, %c0_10] : memref<1x1x16xf32, #tpu.memory_space<vmem>>, vector<1x1x16xf32>
    %cst_11 = arith.constant dense<0.000000e+00> : vector<16xf32>
    %25 = vector.multi_reduction <add>, %23, %cst_11 [0] : vector<16x16xf32> to vector<16xf32>
    %26 = vector.shape_cast %25 : vector<16xf32> to vector<1x16xf32>
    %27 = vector.shape_cast %26 : vector<1x16xf32> to vector<1x1x16xf32>
    %28 = arith.addf %24, %27 : vector<1x1x16xf32>
    %c0_12 = arith.constant 0 : index
    %c0_13 = arith.constant 0 : index
    %c0_14 = arith.constant 0 : index
    %29 = vector.load %arg6[%c0_12, %c0_13, %c0_14] : memref<1x1x16xf32, #tpu.memory_space<vmem>>, vector<1x1x16xf32>
    tpu.vector_store %arg6[%c0_12, %c0_13, %c0_14], %28 {strides = array<i32>} : memref<1x1x16xf32, #tpu.memory_space<vmem>>, vector<1x1x16xf32>,
    %30 = vector.broadcast %5 : vector<1x16xf32> to vector<16x16xf32>
    %31 = arith.mulf %3, %30 : vector<16x16xf32>
    %cst_15 = arith.constant dense<0xFF800000> : vector<16xf32>
    %32 = vector.multi_reduction <maximumf>, %31, %cst_15 [1] : vector<16x16xf32> to vector<16xf32>
    %33 = vector.shape_cast %32 : vector<16xf32> to vector<16x1xf32>
    %34 = vector.broadcast %33 : vector<16x1xf32> to vector<16x16xf32>
    %35 = arith.subf %31, %34 : vector<16x16xf32>
    %36 = math.exp %35 : vector<16x16xf32>
    %cst_16 = arith.constant dense<0.000000e+00> : vector<16xf32>
    %37 = vector.multi_reduction <add>, %36, %cst_16 [1] : vector<16x16xf32> to vector<16xf32>
    %38 = vector.shape_cast %37 : vector<16xf32> to vector<16x1xf32>
    %39 = math.log %38 : vector<16x1xf32>
    %40 = arith.addf %33, %39 : vector<16x1xf32>
    %cst_17 = arith.constant 0.000000e+00 : f32
    %41 = vector.broadcast %cst_17 : f32 to vector<16x16xf32>
    %42 = arith.select %8, %31, %41 : vector<16x16xi1>, vector<16x16xf32>
    %cst_18 = arith.constant dense<0.000000e+00> : vector<16xf32>
    %43 = vector.multi_reduction <add>, %42, %cst_18 [1] : vector<16x16xf32> to vector<16xf32>
    %44 = vector.shape_cast %43 : vector<16xf32> to vector<16x1xf32>
    %c0_19 = arith.constant 0 : index
    %c0_20 = arith.constant 0 : index
    %c0_21 = arith.constant 0 : index
    %45 = vector.load %arg5[%c0_19, %c0_20, %c0_21] : memref<1x1x1xf32, #tpu.memory_space<vmem>>, vector<1x1x1xf32>
    %46 = arith.subf %40, %44 : vector<16x1xf32>
    %47 = arith.mulf %46, %12 : vector<16x1xf32>
    %cst_22 = arith.constant dense<0.000000e+00> : vector<1xf32>
    %48 = vector.multi_reduction <add>, %47, %cst_22 [0] : vector<16x1xf32> to vector<1xf32>
    %49 = vector.shape_cast %48 : vector<1xf32> to vector<1x1xf32>
    %50 = vector.shape_cast %49 : vector<1x1xf32> to vector<1x1x1xf32>
    %51 = arith.addf %45, %50 : vector<1x1x1xf32>
    %c0_23 = arith.constant 0 : index
    %c0_24 = arith.constant 0 : index
    %c0_25 = arith.constant 0 : index
    %52 = vector.load %arg5[%c0_23, %c0_24, %c0_25] : memref<1x1x1xf32, #tpu.memory_space<vmem>>, vector<1x1x1xf32>
    tpu.vector_store %arg5[%c0_23, %c0_24, %c0_25], %51 {strides = array<i32>} : memref<1x1x1xf32, #tpu.memory_space<vmem>>, vector<1x1x1xf32>,
    return
  }
  func.func @transform_0(%arg0: i32, %arg1: i32) -> (i32, i32) {
    %c1_i32 = arith.constant 1 : i32
    %0 = arith.muli %arg0, %c1_i32 : i32
    %1 = arith.addi %0, %arg1 : i32
    %c0_i32 = arith.constant 0 : i32
    %c0_i32_0 = arith.constant 0 : i32
    return %1, %c0_i32 : i32, i32
  }
  func.func @transform_1(%arg0: i32, %arg1: i32) -> (i32, i32) {
    %c1_i32 = arith.constant 1 : i32
    %0 = arith.muli %arg0, %c1_i32 : i32
    %1 = arith.addi %0, %arg1 : i32
    %c0_i32 = arith.constant 0 : i32
    %c0_i32_0 = arith.constant 0 : i32
    return %1, %c0_i32 : i32, i32
  }
  func.func @transform_2(%arg0: i32, %arg1: i32) -> (i32, i32) {
    %c0_i32 = arith.constant 0 : i32
    %c0_i32_0 = arith.constant 0 : i32
    %c0_i32_1 = arith.constant 0 : i32
    return %c0_i32, %c0_i32_0 : i32, i32
  }
  func.func @transform_3(%arg0: i32, %arg1: i32) -> (i32, i32, i32) {
    %c0_i32 = arith.constant 0 : i32
    %c0_i32_0 = arith.constant 0 : i32
    %c0_i32_1 = arith.constant 0 : i32
    return %arg0, %c0_i32, %c0_i32_0 : i32, i32, i32
  }
  func.func @transform_4(%arg0: i32, %arg1: i32) -> (i32, i32, i32) {
    %c0_i32 = arith.constant 0 : i32
    %c0_i32_0 = arith.constant 0 : i32
    %c0_i32_1 = arith.constant 0 : i32
    return %arg0, %c0_i32, %c0_i32_0 : i32, i32, i32
  }
}

</mosaic_0001>

<llo_original>
// kernel: _superloss_impl.1
$region0: #{_superloss_impl.1}
  #allocation0 [shape = 'u32[]', space=smem, size = 0x4, offset = 0x4, fixed_abs, tag = 'smem constant byte address 0x4 - core index']
  #allocation1 [shape = 'u32[144,128]{1,0:T(1,128)}', space=vmem, size = 0x12000, scoped, tag = 'internal scratch']
  %s0 = inlined_call_operand.hbm [shape: f32[16,16], index: 0, kind: input, shape index: {}]
  %s1 = inlined_call_operand.hbm [shape: s32[16,1], index: 1, kind: input, shape index: {}]
  %s2 = inlined_call_operand.hbm [shape: f32[1,16], index: 2, kind: input, shape index: {}]
  %s3 = inlined_call_operand.hbm [shape: f32[1,1,1], index: 3, kind: output, shape index: {0}]
  %s4 = inlined_call_operand.hbm [shape: f32[1,1,16], index: 4, kind: output, shape index: {1}]
  %5 = xla_tuple %s3, %s4
  %s6 = sld [smem:[#allocation0]]
  $region46: #{_superloss_impl.1} parent=0
    _
  %s8 = ssub.s32 1, %s6
  %s9 = scalar_select 0, %s8, %s6
  $region1: #{_superloss_impl.1} parent=0
    #allocation2 [shape = 'u8[8192]{0}', space=vmem, size = 0x2000, scoped, tag = 'input window, operand 0, single buffered']
    #allocation3 [shape = 's32[1]{0}', space=sflag, size = 0x4, scoped, tag = 'scoped memory for _superloss_impl.1']
    #allocation4 [shape = 's32[1]{0}', space=sflag, size = 0x4, scoped, tag = 'scoped memory for _superloss_impl.1']
    #allocation5 [shape = 'u8[8192]{0}', space=vmem, size = 0x2000, scoped, tag = 'input window, operand 1, single buffered']
    #allocation6 [shape = 's32[1]{0}', space=sflag, size = 0x4, scoped, tag = 'scoped memory for _superloss_impl.1']
    #allocation7 [shape = 'u8[512]{0}', space=vmem, size = 0x400, scoped, tag = 'input window, operand 2, single buffered']
    #allocation8 [shape = 'u8[512]{0}', space=vmem, size = 0x400, scoped, tag = 'output window, operand 0, single buffered']
    #allocation9 [shape = 'u8[512]{0}', space=vmem, size = 0x400, scoped, tag = 'output window, operand 1, single buffered']
    #allocation10 [shape = 's32[1]{0}', space=sflag, size = 0x4, scoped, tag = 'scoped memory for _superloss_impl.1']
    %10 = vsyncpa [#allocation3], 0
    %11 = vsyncpa [#allocation6], 0
    %12 = vsyncpa [#allocation4], 0
    %13 = vsyncpa [#allocation10], 0
    // Predicated region
    $region2: #{_superloss_impl.1} parent=1 // pred_check
      _
    $region3: #{_superloss_impl.1} parent=1 // pred_check_branch
      %15 = sbr.rel (0) target = $region5
    $region4: #{_superloss_impl.1} parent=1 // pred_region
      %s16 = sadd.s32 0, 0
      %s17 = smul.u32 2, %s16
      %s19 = ssub.s32 256, 256
      %20 = vsyncadd [#allocation3], %s19
      %s21 = smul.addr %s17, 128
      %s22 = scalar_lea.hbm %s0, %s21
      %s23 = sshll.u32 [#allocation2], 4
      %s24 = int_to_ptr.vmem [resolvable:$true] %s23
      %29 = dma.hbm_to_vmem [thread:$0]  %s22, 256, %s24, [#allocation3], 128, 128, 8
    $region5: #{_superloss_impl.1} parent=1 // pred_fallthru
      _
    // Predicated region
    $region6: #{_superloss_impl.1} parent=1 // pred_check
      _
    $region7: #{_superloss_impl.1} parent=1 // pred_check_branch
      %31 = sbr.rel (0) target = $region9
    $region8: #{_superloss_impl.1} parent=1 // pred_region
      %s32 = sadd.s32 0, 0
      %s33 = smul.u32 2, %s32
      %s35 = ssub.s32 256, 256
      %36 = vsyncadd [#allocation6], %s35
      %s37 = smul.addr %s33, 128
      %s38 = scalar_lea.hbm %s1, %s37
      %s39 = sshll.u32 [#allocation5], 4
      %s40 = int_to_ptr.vmem [resolvable:$true] %s39
      %45 = dma.hbm_to_vmem [thread:$0]  %s38, 256, %s40, [#allocation6], 128, 128, 8
    $region9: #{_superloss_impl.1} parent=1 // pred_fallthru
      _
    // Predicated region
    $region10: #{_superloss_impl.1} parent=1 // pred_check
      _
    $region11: #{_superloss_impl.1} parent=1 // pred_check_branch
      %47 = sbr.rel (0) target = $region13
    $region12: #{_superloss_impl.1} parent=1 // pred_region
      %s49 = ssub.s32 16, 16
      %50 = vsyncadd [#allocation6], %s49
      %s52 = sshll.u32 [#allocation7], 4
      %s53 = int_to_ptr.vmem [resolvable:$true] %s52
      %55 = dma.hbm_to_vmem [thread:$0]  %s2, 16, %s53, [#allocation6]
    $region13: #{_superloss_impl.1} parent=1 // pred_fallthru
      _
    // Predicated region
    $region14: #{_superloss_impl.1} parent=1 // pred_check
      _
    $region15: #{_superloss_impl.1} parent=1 // pred_check_branch
      %57 = sbr.rel (0) target = $region17
    $region16: #{_superloss_impl.1} parent=1 // pred_region
      %58 = dma.done [#allocation3], 256
    $region17: #{_superloss_impl.1} parent=1 // pred_fallthru
      _
    // Predicated region
    $region18: #{_superloss_impl.1} parent=1 // pred_check
      _
    $region19: #{_superloss_impl.1} parent=1 // pred_check_branch
      %60 = sbr.rel (0) target = $region21
    $region20: #{_superloss_impl.1} parent=1 // pred_region
      %61 = dma.done [#allocation6], 256
    $region21: #{_superloss_impl.1} parent=1 // pred_fallthru
      _
    // Predicated region
    $region22: #{_superloss_impl.1} parent=1 // pred_check
      _
    $region23: #{_superloss_impl.1} parent=1 // pred_check_branch
      %63 = sbr.rel (0) target = $region25
    $region24: #{_superloss_impl.1} parent=1 // pred_region
      %64 = dma.done [#allocation6], 16
    $region25: #{_superloss_impl.1} parent=1 // pred_fallthru
      _
    %s65 = sadd.s32 0, 0
    %s66 = smul.u32 2, %s65
    %s67 = sadd.s32 0, 0
    %s68 = smul.u32 2, %s67
    %p69 = scmp.eq.s32.totalorder 0, 0
    // Predicated region
    $region26: #{_superloss_impl.1} parent=1 // pred_check
      %p70 = pneg %p69
    $region27: #{_superloss_impl.1} parent=1 // pred_check_branch
      %72 = sbr.rel (%p70) target = $region29
    $region28: #{_superloss_impl.1} parent=1 // pred_region
      %vm73 = vcmask 0
      %74 = vst.msk [vmem:[#allocation8] sm:$0x1] %vm73, 0.0
      %vm75 = vcmask 122880
      %76 = vst.msk [vmem:[#allocation9] sm:$0x1] %vm75, 0.0
    $region29: #{_superloss_impl.1} parent=1 // pred_fallthru
      _
    %v77 = vld [vmem:[#allocation2] sm:$0xff]
    %v78 = vld [vmem:[#allocation2 + $0x8] sm:$0xff]
    %v79 = vld [vmem:[#allocation5] sm:$0xff]
    %v80 = vld [vmem:[#allocation5 + $0x8] sm:$0xff]
    %v81 = vld [vmem:[#allocation7] sm:$0x1]
    %v82 = vlaneseq
    %v83 = vand.u32 %v82, 127
    %84 = vset.pattern.permute.xlu0 0
    %85 = vperm.xlu0 %84, %v79
    %v86 = vpop.permute.xlu0 %85
    %87 = vset.pattern.permute.xlu0 0
    %88 = vperm.xlu0 %87, %v80
    %v89 = vpop.permute.xlu0 %88
    %vm90 = vcmp.eq.s32.totalorder %v83, %v86
    %vm91 = vcmp.eq.s32.totalorder %v83, %v89
    %vm92 = vcmp.ge.s32.totalorder %v79, 0
    %vm93 = vcmp.ge.s32.totalorder %v80, 0
    %v94 = vsel %vm92, 1, 0
    %v95 = vsel %vm93, 1, 0
    %v96 = vcvt.s32.f32 %v94
    %v97 = vcvt.s32.f32 %v95
    %vm98 = vcmask 130048
    %v99 = vsel %vm98, %v77, -inf
    %100 = vmax.xlane.f32.xlu0 %v99
    %v101 = vpop.xlane.xlu0 %100
    %v102 = vsel %vm98, %v78, -inf
    %103 = vmax.xlane.f32.xlu0 %v102
    %v104 = vpop.xlane.xlu0 %103
    %v105 = vsub.f32 %v77, %v101
    %v106 = vsub.f32 %v78, %v104
    %v107 = vmul.f32 %v105, 1.442695
    %v108 = vpow.pop %v107
    %v109 = vmul.f32 %v106, 1.442695
    %v110 = vpow.pop %v109
    %v111 = vsel %vm98, %v108, 0.0
    %112 = vadd.xlane.f32.xlu0 %v111
    %v113 = vpop.xlane.xlu0 %112
    %v114 = vsel %vm98, %v110, 0.0
    %115 = vadd.xlane.f32.xlu0 %v114
    %v116 = vpop.xlane.xlu0 %115
    %v117 = vrcp.pop %v113
    %v118 = vrcp.pop %v116
    %v119 = vmul.f32 %v117, %v96
    %v120 = vmul.f32 %v118, %v97
    %122 = vset.pattern.permute.xlu0 0
    %123 = vperm.xlu0 %122, %v119
    %v124 = vpop.permute.xlu0 %123
    %127 = vset.pattern.permute.xlu0 0
    %128 = vperm.xlu0 %127, %v120
    %v129 = vpop.permute.xlu0 %128
    %v131 = vmul.f32 %v108, %v124
    %v132 = vmul.f32 %v110, %v129
    %v133 = vld [vmem:[#allocation9] sm:$0x1]
    %v134 = vsel %vm98, %v131, 0.0
    %v135 = vsel %vm98, %v132, 0.0
    %v136 = vadd.f32 %v134, %v135
    %v137 = vrot.slane %v136, 4
    %v138 = vadd.f32 %v136, %v137
    %v139 = vrot.slane %v138, 2
    %v140 = vadd.f32 %v138, %v139
    %v141 = vrot.slane %v140, 1
    %v142 = vadd.f32 %v140, %v141
    %v143 = vadd.f32 %v133, %v142
    %vm144 = vcmask 122880
    %145 = vst.msk [vmem:[#allocation9] sm:$0x1] %vm144, %v143
    %v147 = vlaneseq
    %v148 = vshrl.u32 %v147, 7
    %v149 = vsub.s32 0, %v148
    %v150 = vrot.slane %v81, %v149
    %v152 = vmul.f32 %v77, %v150
    %v153 = vmul.f32 %v78, %v150
    %v154 = vsel %vm98, %v152, -inf
    %155 = vmax.xlane.f32.xlu0 %v154
    %v156 = vpop.xlane.xlu0 %155
    %v157 = vsel %vm98, %v153, -inf
    %158 = vmax.xlane.f32.xlu0 %v157
    %v159 = vpop.xlane.xlu0 %158
    %v160 = vsub.f32 %v152, %v156
    %v161 = vsub.f32 %v153, %v159
    %v162 = vmul.f32 %v160, 1.442695
    %v163 = vpow.pop %v162
    %v164 = vmul.f32 %v161, 1.442695
    %v165 = vpow.pop %v164
    %v166 = vsel %vm98, %v163, 0.0
    %167 = vadd.xlane.f32.xlu0 %v166
    %v168 = vpop.xlane.xlu0 %167
    %v169 = vsel %vm98, %v165, 0.0
    %170 = vadd.xlane.f32.xlu0 %v169
    %v171 = vpop.xlane.xlu0 %170
    %v172 = vlog2.pop %v168
    %v173 = vmul.f32 %v172, 0.6931472
    %v174 = vlog2.pop %v171
    %v175 = vmul.f32 %v174, 0.6931472
    %v176 = vadd.f32 %v156, %v173
    %v177 = vadd.f32 %v159, %v175
    %v178 = vsel %vm90, %v152, 0.0
    %v179 = vsel %vm91, %v153, 0.0
    %v180 = vsel %vm98, %v178, 0.0
    %181 = vadd.xlane.f32.xlu0 %v180
    %v182 = vpop.xlane.xlu0 %181
    %v183 = vsel %vm98, %v179, 0.0
    %184 = vadd.xlane.f32.xlu0 %v183
    %v185 = vpop.xlane.xlu0 %184
    %v186 = vld [vmem:[#allocation8] sm:$0x1]
    %v187 = vsub.f32 %v176, %v182
    %v188 = vsub.f32 %v177, %v185
    %v189 = vmul.f32 %v187, %v96
    %v190 = vmul.f32 %v188, %v97
    %vm191 = vcmask 7168
    %v192 = vsel %vm191, %v189, 0.0
    %v193 = vsel %vm191, %v190, 0.0
    %v194 = vadd.f32 %v192, %v193
    %v195 = vrot.slane %v194, 4
    %v196 = vadd.f32 %v194, %v195
    %v197 = vrot.slane %v196, 2
    %v198 = vadd.f32 %v196, %v197
    %v199 = vrot.slane %v198, 1
    %v200 = vadd.f32 %v198, %v199
    %v201 = vadd.f32 %v186, %v200
    %vm202 = vcmask 0
    %203 = vst.msk [vmem:[#allocation8] sm:$0x1] %vm202, %v201
    // Predicated region
    $region30: #{_superloss_impl.1} parent=1 // pred_check
      _
    $region31: #{_superloss_impl.1} parent=1 // pred_check_branch
      %205 = sbr.rel (0) target = $region33
    $region32: #{_superloss_impl.1} parent=1 // pred_region
      %s207 = ssub.s32 16, 16
      %208 = vsyncadd [#allocation4], %s207
      %s210 = sshll.u32 [#allocation8], 4
      %s211 = int_to_ptr.vmem [resolvable:$true] %s210
      %213 = dma.vmem_to_hbm [thread:$0]  %s211, 16, %s3, [#allocation4]
    $region33: #{_superloss_impl.1} parent=1 // pred_fallthru
      _
    // Predicated region
    $region34: #{_superloss_impl.1} parent=1 // pred_check
      _
    $region35: #{_superloss_impl.1} parent=1 // pred_check_branch
      %215 = sbr.rel (0) target = $region37
    $region36: #{_superloss_impl.1} parent=1 // pred_region
      %s217 = ssub.s32 16, 16
      %218 = vsyncadd [#allocation10], %s217
      %s220 = sshll.u32 [#allocation9], 4
      %s221 = int_to_ptr.vmem [resolvable:$true] %s220
      %223 = dma.vmem_to_hbm [thread:$0]  %s221, 16, %s4, [#allocation10]
    $region37: #{_superloss_impl.1} parent=1 // pred_fallthru
      _
    // Predicated region
    $region38: #{_superloss_impl.1} parent=1 // pred_check
      _
    $region39: #{_superloss_impl.1} parent=1 // pred_check_branch
      %225 = sbr.rel (0) target = $region41
    $region40: #{_superloss_impl.1} parent=1 // pred_region
      %226 = dma.done [#allocation4], 16
    $region41: #{_superloss_impl.1} parent=1 // pred_fallthru
      _
    // Predicated region
    $region42: #{_superloss_impl.1} parent=1 // pred_check
      _
    $region43: #{_superloss_impl.1} parent=1 // pred_check_branch
      %228 = sbr.rel (0) target = $region45
    $region44: #{_superloss_impl.1} parent=1 // pred_region
      %229 = dma.done [#allocation10], 16
    $region45: #{_superloss_impl.1} parent=1 // pred_fallthru
      _
    %230 = vsyncpa [#allocation3], 1
    %231 = vsyncpa [#allocation6], 1
    %232 = vsyncpa [#allocation4], 1
    %233 = vsyncpa [#allocation10], 1

</llo_original>
